<compile_context>
chip_gen: v7x
topology: tpu7x:2x2x1
jax: 0.10.0
libtpu: 0.0.40
codegen_flags: <defaults>
</compile_context>

<pallas_src>
import functools

import numpy as np
import jax
import jax.numpy as jnp
from jax.experimental import pallas as pl
from jax.experimental.pallas import tpu as pltpu


# ----------------------------------------------------------------------------
# Token-tiled linear kernel (weights/bias resident across the grid)
# ----------------------------------------------------------------------------
def _linear_kernel(x_ref, w_ref, b_ref, o_ref):
    o_ref[...] = (jnp.dot(x_ref[...], w_ref[...],
                          preferred_element_type=jnp.float32)
                  + b_ref[...]).astype(o_ref.dtype)


def linear_pallas(x, w, b, *, tm=256):
    """x: (M, Kin), w: (Kin, Kout), b: (Kout,) -> (M, Kout)."""
    M, Kin = x.shape
    Kout = w.shape[1]
    tm = min(tm, M)
    return pl.pallas_call(
        _linear_kernel,
        out_shape=jax.ShapeDtypeStruct((M, Kout), x.dtype),
        grid=(pl.cdiv(M, tm),),
        in_specs=[
            pl.BlockSpec((tm, Kin), lambda i: (i, 0)),
            pl.BlockSpec((Kin, Kout), lambda i: (0, 0)),   # resident weight
            pl.BlockSpec((1, Kout), lambda i: (0, 0)),     # resident bias
        ],
        out_specs=pl.BlockSpec((tm, Kout), lambda i: (i, 0)),
        compiler_params=pltpu.CompilerParams(
            dimension_semantics=("parallel",)),
    )(x, w, b.reshape(1, Kout))


# ----------------------------------------------------------------------------
# Fused-head slide-attention kernel (one batch element per program)
# ----------------------------------------------------------------------------
def _slide_attn_kernel(f_ref, wk_ref, wv_ref, kb_ref, vb_ref, ssum_ref, o_ref,
                       *, hdim, wdim, ka, roll_mode):
    """f_ref : (1, N, 3*Cf)   q|k|v, fused-head channels-last; q pre-scaled
       wk_ref: (KK, Cf, HK)   WK_j[h*cph+c, h*KK+i] = delta_ij + dwc1[i,j,c]
       wv_ref: (KK, HK, Cf)   WV_j[h*KK+i, h*cph+c] = same
       kb_ref: (Cf, HK)       per-head/tap k bias (conv biases + rpb)
       vb_ref: (HK, Cf)       per-head/tap v bias (conv biases)
       ssum_ref: (HK, HK)     block-diagonal all-ones (per-head softmax sums)
       o_ref : (1, N, Cf)     Cf = num_heads * cph, HK = num_heads * KK
    """
    KK = ka * ka
    pad = ka // 2
    N = f_ref.shape[1]
    Cf = f_ref.shape[2] // 3

    f = f_ref[0]
    q = f[:, :Cf]                  # attention scale already folded into params
    k = f[:, Cf:2 * Cf]
    v = f[:, 2 * Cf:]

    n_idx = jax.lax.broadcasted_iota(jnp.int32, (N, Cf), 0)
    yy = n_idx // wdim
    xx = n_idx % wdim

    def shifted(a, tap):
        # zero-padded spatial shift: out[(y, x)] = a[(y+dy, x+dx)] (0 off-image)
        dy = tap // ka - pad
        dx = tap % ka - pad
        off = (dy * wdim + dx) % N
        if off == 0:
            r = a
        elif roll_mode == "np":      # pltpu.roll(a, s)[n] == a[(n - s) % N]
            r = pltpu.roll(a, (N - off) % N, axis=0)
        elif roll_mode == "rev":     # pltpu.roll(a, s)[n] == a[(n + s) % N]
            r = pltpu.roll(a, off, axis=0)
        else:                        # fallback: concatenated static slices
            r = jnp.concatenate([a[off:], a[:off]], axis=0)
        valid = ((yy + dy >= 0) & (yy + dy < hdim) &
                 (xx + dx >= 0) & (xx + dx < wdim))
        return jnp.where(valid, r, 0.0)

    # Per-head logits for all heads side by side: (N, HK).  Tap mixing on MXU.
    logits = jnp.dot(q, kb_ref[...], preferred_element_type=jnp.float32)
    for j in range(KK):
        logits = logits + jnp.dot(q * shifted(k, j), wk_ref[j],
                                  preferred_element_type=jnp.float32)

    # Softmax over the KK taps of each head.  A row-global max is a valid
    # stabilizing shift for every head block (constant within each block).
    m = jnp.max(logits, axis=-1, keepdims=True)
    e = jnp.exp(logits - m)
    denom = jnp.dot(e, ssum_ref[...], preferred_element_type=jnp.float32)
    attn = e * pl.reciprocal(denom, approx=True)

    # out[n, h*cph+c] = sum_i attn[n, h*KK+i] * (dep_conv + dep_conv1)(v)
    out = jnp.dot(attn, vb_ref[...], preferred_element_type=jnp.float32)
    for j in range(KK):
        aj = jnp.dot(attn, wv_ref[j], preferred_element_type=jnp.float32)
        out = out + aj * shifted(v, j)

    o_ref[0] = out.astype(o_ref.dtype)


def slide_attention_core(f, wk, wv, kb, vb, ssum, *, hdim, wdim, ka, roll_mode):
    B, N, C3 = f.shape
    Cf = C3 // 3
    KK = ka * ka
    HK = kb.shape[1]
    kernel = functools.partial(_slide_attn_kernel, hdim=hdim, wdim=wdim, ka=ka,
                               roll_mode=roll_mode)
    return pl.pallas_call(
        kernel,
        out_shape=jax.ShapeDtypeStruct((B, N, Cf), f.dtype),
        grid=(B,),
        in_specs=[
            pl.BlockSpec((1, N, C3), lambda b: (b, 0, 0)),
            pl.BlockSpec((KK, Cf, HK), lambda b: (0, 0, 0)),
            pl.BlockSpec((KK, HK, Cf), lambda b: (0, 0, 0)),
            pl.BlockSpec((Cf, HK), lambda b: (0, 0)),
            pl.BlockSpec((HK, Cf), lambda b: (0, 0)),
            pl.BlockSpec((HK, HK), lambda b: (0, 0)),
        ],
        out_specs=pl.BlockSpec((1, N, Cf), lambda b: (b, 0, 0)),
        compiler_params=pltpu.CompilerParams(
            dimension_semantics=("parallel",)),
    )(f, wk, wv, kb, vb, ssum)


# ----------------------------------------------------------------------------
# Runtime probe: is pltpu.roll available, and which rotation direction?
# ----------------------------------------------------------------------------
def probe_roll_mode(n, c):
    def kern(x_ref, o_ref):
        o_ref[...] = pltpu.roll(x_ref[...], 1, axis=0)
    x = np.arange(n * c, dtype=np.float32).reshape(n, c)
    try:
        y = pl.pallas_call(
            kern, out_shape=jax.ShapeDtypeStruct((n, c), jnp.float32)
        )(jnp.asarray(x))
        y = np.asarray(jax.block_until_ready(y))
    except Exception:
        return None
    if np.array_equal(y, np.roll(x, 1, axis=0)):
        return "np"
    if np.array_equal(y, np.roll(x, -1, axis=0)):
        return "rev"
    return None


# ----------------------------------------------------------------------------
# Parameters (deterministic synthetic init) + kernel-friendly rearrangements
# ----------------------------------------------------------------------------
def init_params(key, dim, num_heads, ka, dim_reduction, qk_scale=None):
    nh = num_heads
    cr = dim // dim_reduction
    cph = cr // nh
    Cf = cr
    KK = ka * ka
    HK = nh * KK
    scale = qk_scale if qk_scale is not None else (dim // nh) ** (-0.5)

    ks = jax.random.split(key, 8)
    # Raw module parameters (PyTorch layout) -- used by the plain-JAX reference.
    wqkv = jax.random.normal(ks[0], (dim, 3 * cr), jnp.float32) * 0.05   # (in, out)
    bqkv = jax.random.normal(ks[1], (3 * cr,), jnp.float32) * 0.05
    wproj = jax.random.normal(ks[2], (cr, dim), jnp.float32) * 0.05
    bproj = jax.random.normal(ks[3], (dim,), jnp.float32) * 0.05
    b0 = jax.random.normal(ks[4], (cph * KK,), jnp.float32) * 0.05       # dep_conv.bias
    w1_t = jax.random.normal(ks[5], (cph * KK, 1, ka, ka), jnp.float32) * 0.05  # dep_conv1.w
    b1 = jax.random.normal(ks[6], (cph * KK,), jnp.float32) * 0.05       # dep_conv1.bias
    rpb = jax.random.normal(ks[7], (nh, KK), jnp.float32) * 0.02         # rel. pos. bias

    # --- kernel-friendly rearrangements (one-time parameter transforms) ------
    # qkv columns: PyTorch layout is [head, (q|k|v), c]; fuse heads so the
    # Pallas path sees [q_allheads | k_allheads | v_allheads] with ch=h*cph+c,
    # and fold the attention scale into the q columns.
    perm = np.empty(3 * Cf, dtype=np.int32)
    for part in range(3):
        for h in range(nh):
            for c in range(cph):
                perm[part * Cf + h * cph + c] = h * 3 * cph + part * cph + c
    col_scale = np.ones((3 * Cf,), np.float32)
    col_scale[:Cf] = scale
    wqkv_f = wqkv[:, perm] * col_scale[None, :]
    bqkv_f = bqkv[perm] * col_scale

    # Tap-mixing matrix: W[i, j, c] = delta_ij (frozen dep_conv) + dep_conv1[i, j, c].
    w1 = np.transpose(np.asarray(w1_t).reshape(cph, KK, KK), (1, 2, 0))  # [i, j, c]
    W = w1 + np.eye(KK, dtype=np.float32)[:, :, None]
    bsum = np.asarray(b0 + b1).reshape(cph, KK)                          # [c, i]
    rpb_np = np.asarray(rpb)                                             # [h, i]

    wk = np.zeros((KK, Cf, HK), np.float32)
    wv = np.zeros((KK, HK, Cf), np.float32)
    kb = np.zeros((Cf, HK), np.float32)
    vb = np.zeros((HK, Cf), np.float32)
    ssum = np.zeros((HK, HK), np.float32)
    for h in range(nh):
        cs, ce = h * cph, (h + 1) * cph
        ts, te = h * KK, (h + 1) * KK
        for j in range(KK):
            wk[j, cs:ce, ts:te] = W[:, j, :].T      # (cph, KK)
            wv[j, ts:te, cs:ce] = W[:, j, :]        # (KK, cph)
        kb[cs:ce, ts:te] = bsum + rpb_np[h][None, :]
        vb[ts:te, cs:ce] = bsum.T
        ssum[ts:te, ts:te] = 1.0

    return dict(wqkv=wqkv, bqkv=bqkv, wproj=wproj, bproj=bproj,
                b0=b0, w1_t=w1_t, b1=b1, rpb=rpb,
                wqkv_f=wqkv_f, bqkv_f=bqkv_f,
                wk=jnp.asarray(wk), wv=jnp.asarray(wv),
                kb=jnp.asarray(kb), vb=jnp.asarray(vb),
                ssum=jnp.asarray(ssum))


def slide_attention_forward(x, params, *, num_heads, ka, dim_reduction,
                            roll_mode=None):
    """x: (B, C, H, W) NCHW (like the PyTorch module). Returns (y, None, None)."""
    B, C, H, W = x.shape
    cr = C // dim_reduction
    N = H * W

    xt = jnp.transpose(x, (0, 2, 3, 1)).reshape(B * N, C)        # NCHW -> tokens x C
    qkv = linear_pallas(xt, params['wqkv_f'], params['bqkv_f'])  # (B*N, 3*cr), fused layout
    f = qkv.reshape(B, N, 3 * cr)                                # free reshape, no transpose
    o = slide_attention_core(f, params['wk'], params['wv'], params['kb'],
                             params['vb'], params['ssum'],
                             hdim=H, wdim=W, ka=ka, roll_mode=roll_mode)  # (B, N, cr)
    y = linear_pallas(o.reshape(B * N, cr), params['wproj'], params['bproj'])
    y = y.reshape(B, H, W, C).transpose(0, 3, 1, 2)              # back to NCHW
    return y, None, None


# ----------------------------------------------------------------------------
# Plain-JAX reference (mirrors the PyTorch forward) for a self-check
# ----------------------------------------------------------------------------
def reference_forward(x, params, *, num_heads, ka, dim_reduction):
    B, C, H, W = x.shape
    nh = num_heads
    cr = C // dim_reduction
    cph = cr // nh
    KK = ka * ka
    pad = ka // 2
    scale = (C // nh) ** (-0.5)
    hp = jax.lax.Precision.HIGHEST

    xhwc = jnp.transpose(x, (0, 2, 3, 1))
    qkv = jnp.dot(xhwc, params['wqkv'], precision=hp) + params['bqkv']
    f_conv = jnp.transpose(qkv, (0, 3, 1, 2)).reshape(B * nh, 3 * cph, H, W)
    q = (f_conv[:, :cph] * scale).reshape(B, nh, cph, 1, H, W)
    k = f_conv[:, cph:2 * cph]
    v = f_conv[:, 2 * cph:]

    # frozen identity-unfold depthwise weight of dep_conv (reset_parameters)
    w0 = np.zeros((cph * KK, 1, ka, ka), np.float32)
    for c in range(cph):
        for i in range(KK):
            w0[c * KK + i, 0, i // ka, i % ka] = 1.0
    w0 = jnp.asarray(w0)

    def dwconv(inp, w, b):
        out = jax.lax.conv_general_dilated(
            inp, w, window_strides=(1, 1), padding=((pad, pad), (pad, pad)),
            dimension_numbers=('NCHW', 'OIHW', 'NCHW'),
            feature_group_count=cph, precision=hp)
        return out + b[None, :, None, None]

    kk = (dwconv(k, w0, params['b0']) + dwconv(k, params['w1_t'], params['b1'])
          ).reshape(B, nh, cph, KK, H, W)
    vv = (dwconv(v, w0, params['b0']) + dwconv(v, params['w1_t'], params['b1'])
          ).reshape(B, nh, cph, KK, H, W)
    kk = kk + params['rpb'].reshape(1, nh, 1, KK, 1, 1)

    attn = jnp.sum(q * kk, axis=2, keepdims=True)
    attn = jax.nn.softmax(attn, axis=3)
    out = jnp.sum(attn * vv, axis=3).reshape(B, cr, H, W)
    out = jnp.transpose(out, (0, 2, 3, 1))
    out = jnp.dot(out, params['wproj'], precision=hp) + params['bproj']
    return jnp.transpose(out, (0, 3, 1, 2))


# ----------------------------------------------------------------------------
# Main
# ----------------------------------------------------------------------------
if __name__ == "__main__":
    B, C, H, W = 2, 16, 8, 8
    num_heads, ka, dim_reduction = 2, 3, 4

    key = jax.random.PRNGKey(0)
    kx, kp = jax.random.split(key)
    x = jax.random.normal(kx, (B, C, H, W), jnp.float32)
    params = init_params(kp, C, num_heads, ka, dim_reduction)

    N = H * W
    Cf = C // dim_reduction
    roll_mode = probe_roll_mode(N, Cf)

    def run(mode):
        y, _, _ = slide_attention_forward(
            x, params, num_heads=num_heads, ka=ka,
            dim_reduction=dim_reduction, roll_mode=mode)
        return jax.block_until_ready(y)

    try:
        y = run(roll_mode)
    except Exception:
        if roll_mode is None:
            raise
        roll_mode = None      # pltpu.roll rejected for this shape -> concat shifts
        y = run(None)

    y_ref = reference_forward(x, params, num_heads=num_heads, ka=ka,
                              dim_reduction=dim_reduction)
    np.testing.assert_allclose(np.asarray(y), np.asarray(y_ref),
                               rtol=2e-2, atol=5e-3)
    print("KERNEL_OK")
</pallas_src>

<mosaic_0001>
module attributes {stable_mosaic.version = 11 : i64} {
  func.func @kern(%arg0: memref<64x4xf32, #tpu.memory_space<vmem>>, %arg1: memref<64x4xf32, #tpu.memory_space<vmem>>) attributes {dimension_semantics = [], scalar_prefetch = 0 : i64, scratch_operands = 0 : i64, tpu.core_type = #tpu.core_type<tc>} {
    %c0 = arith.constant 0 : index
    %c0_0 = arith.constant 0 : index
    %0 = vector.load %arg0[%c0, %c0_0] : memref<64x4xf32, #tpu.memory_space<vmem>>, vector<64x4xf32>
    %c1_i32 = arith.constant 1 : i32
    %1 = tpu.dynamic_rotate %0 by %c1_i32 dim 0 : vector<64x4xf32>, i32 -> vector<64x4xf32>
    %c0_1 = arith.constant 0 : index
    %c0_2 = arith.constant 0 : index
    %2 = vector.load %arg1[%c0_1, %c0_2] : memref<64x4xf32, #tpu.memory_space<vmem>>, vector<64x4xf32>
    tpu.vector_store %arg1[%c0_1, %c0_2], %1 {strides = array<i32>} : memref<64x4xf32, #tpu.memory_space<vmem>>, vector<64x4xf32>,
    return
  }
}

module attributes {stable_mosaic.version = 11 : i64} {
  func.func @_linear_kernel(%arg0: i32, %arg1: memref<128x16xf32, #tpu.memory_space<vmem>>, %arg2: memref<16x12xf32, #tpu.memory_space<vmem>>, %arg3: memref<1x12xf32, #tpu.memory_space<vmem>>, %arg4: memref<128x12xf32, #tpu.memory_space<vmem>>) attributes {dimension_semantics = [#tpu.dimension_semantics<parallel>], iteration_bounds = array<i64: 1>, scalar_prefetch = 0 : i64, scratch_operands = 0 : i64, tpu.core_type = #tpu.core_type<tc>, window_params = [{transform_indices = @transform_0, window_bounds = array<i64: 128, 16>}, {pipeline_mode = #tpu.pipeline_mode<synchronous>, transform_indices = @transform_1, window_bounds = array<i64: 16, 12>}, {pipeline_mode = #tpu.pipeline_mode<synchronous>, transform_indices = @transform_2, window_bounds = array<i64: 1, 12>}, {transform_indices = @transform_3, window_bounds = array<i64: 128, 12>}]} {
    %c0 = arith.constant 0 : index
    %c0_0 = arith.constant 0 : index
    %0 = vector.load %arg1[%c0, %c0_0] : memref<128x16xf32, #tpu.memory_space<vmem>>, vector<128x16xf32>
    %c0_1 = arith.constant 0 : index
    %c0_2 = arith.constant 0 : index
    %1 = vector.load %arg2[%c0_1, %c0_2] : memref<16x12xf32, #tpu.memory_space<vmem>>, vector<16x12xf32>
    %cst = arith.constant dense<0.000000e+00> : vector<128x12xf32>
    %2 = tpu.matmul %0, %1, %cst {dimension_numbers = #tpu.dot_dimension_numbers<[1], [0], [0], [1], [0, 0, 1, 1], [], []>} : vector<128x16xf32>, vector<16x12xf32>, vector<128x12xf32> -> vector<128x12xf32>
    %c0_3 = arith.constant 0 : index
    %c0_4 = arith.constant 0 : index
    %3 = vector.load %arg3[%c0_3, %c0_4] : memref<1x12xf32, #tpu.memory_space<vmem>>, vector<1x12xf32>
    %4 = vector.broadcast %3 : vector<1x12xf32> to vector<128x12xf32>
    %5 = arith.addf %2, %4 : vector<128x12xf32>
    %c0_5 = arith.constant 0 : index
    %c0_6 = arith.constant 0 : index
    %6 = vector.load %arg4[%c0_5, %c0_6] : memref<128x12xf32, #tpu.memory_space<vmem>>, vector<128x12xf32>
    tpu.vector_store %arg4[%c0_5, %c0_6], %5 {strides = array<i32>} : memref<128x12xf32, #tpu.memory_space<vmem>>, vector<128x12xf32>,
    return
  }
  func.func @transform_0(%arg0: i32) -> (i32, i32) {
    %c0_i32 = arith.constant 0 : i32
    %c0_i32_0 = arith.constant 0 : i32
    return %arg0, %c0_i32 : i32, i32
  }
  func.func @transform_1(%arg0: i32) -> (i32, i32) {
    %c0_i32 = arith.constant 0 : i32
    %c0_i32_0 = arith.constant 0 : i32
    %c0_i32_1 = arith.constant 0 : i32
    return %c0_i32, %c0_i32_0 : i32, i32
  }
  func.func @transform_2(%arg0: i32) -> (i32, i32) {
    %c0_i32 = arith.constant 0 : i32
    %c0_i32_0 = arith.constant 0 : i32
    %c0_i32_1 = arith.constant 0 : i32
    return %c0_i32, %c0_i32_0 : i32, i32
  }
  func.func @transform_3(%arg0: i32) -> (i32, i32) {
    %c0_i32 = arith.constant 0 : i32
    %c0_i32_0 = arith.constant 0 : i32
    return %arg0, %c0_i32 : i32, i32
  }
}

</mosaic_0001>

<llo_original>
// kernel: tpu_custom_call.1
$region0: #{tpu_custom_call.1}
  #allocation0 [shape = 'u32[]', space=smem, size = 0x4, offset = 0x4, fixed_abs, tag = 'smem constant byte address 0x4 - core index']
  #allocation1 [shape = 'u32[144,128]{1,0:T(1,128)}', space=vmem, size = 0x12000, scoped, tag = 'internal scratch']
  %s0 = inlined_call_operand.vmem [shape: f32[64,4], index: 0, kind: input, shape index: {}]
  %s1 = inlined_call_operand.vmem [shape: f32[64,4], index: 1, kind: output, shape index: {}]
  %s2 = sld [smem:[#allocation0]]
  $region14: #{tpu_custom_call.1} parent=0
    _
  %s4 = ssub.s32 1, %s2
  %s5 = scalar_select 0, %s4, %s2
  // Predicated region
  $region2: #{tpu_custom_call.1} parent=0 // pred_check
    _
  $region3: #{tpu_custom_call.1} parent=0 // pred_check_branch
    %7 = sbr.rel (0) target = $region5
  $region4: #{tpu_custom_call.1} parent=0 // pred_region
    _
  $region5: #{tpu_custom_call.1} parent=0 // pred_fallthru
    _
  %v8 = vld [vmem:[%s0] sm:$0xff]
  %v9 = vld [vmem:[%s0 + $0x8] sm:$0xff]
  %v10 = vld [vmem:[%s0 + $0x10] sm:$0xff]
  %v11 = vld [vmem:[%s0 + $0x18] sm:$0xff]
  %v12 = vld [vmem:[%s0 + $0x20] sm:$0xff]
  %v13 = vld [vmem:[%s0 + $0x28] sm:$0xff]
  %v14 = vld [vmem:[%s0 + $0x30] sm:$0xff]
  %v15 = vld [vmem:[%s0 + $0x38] sm:$0xff]
  %v16 = vrot.slane %v8, 7
  %v17 = vrot.slane %v9, 7
  %v18 = vrot.slane %v10, 7
  %v19 = vrot.slane %v11, 7
  %v20 = vrot.slane %v12, 7
  %v21 = vrot.slane %v13, 7
  %v22 = vrot.slane %v14, 7
  %v23 = vrot.slane %v15, 7
  %v24 = vlaneseq
  %v25 = vshrl.u32 %v24, 7
  %vm26 = vcmp.lt.s32.totalorder %v25, 1
  %v27 = vsel %vm26, %v22, %v23
  %v28 = vsel %vm26, %v21, %v22
  %v29 = vsel %vm26, %v20, %v21
  %v30 = vsel %vm26, %v19, %v20
  %v31 = vsel %vm26, %v18, %v19
  %v32 = vsel %vm26, %v17, %v18
  %v33 = vsel %vm26, %v16, %v17
  %v34 = vsel %vm26, %v23, %v16
  %vm35 = vcmask 31744
  %36 = vst.msk [vmem:[%s1] sm:$0xff] %vm35, %v34
  %37 = vst.msk [vmem:[%s1 + $0x8] sm:$0xff] %vm35, %v33
  %38 = vst.msk [vmem:[%s1 + $0x10] sm:$0xff] %vm35, %v32
  %39 = vst.msk [vmem:[%s1 + $0x18] sm:$0xff] %vm35, %v31
  %40 = vst.msk [vmem:[%s1 + $0x20] sm:$0xff] %vm35, %v30
  %41 = vst.msk [vmem:[%s1 + $0x28] sm:$0xff] %vm35, %v29
  %42 = vst.msk [vmem:[%s1 + $0x30] sm:$0xff] %vm35, %v28
  %43 = vst.msk [vmem:[%s1 + $0x38] sm:$0xff] %vm35, %v27
  // Predicated region
  $region6: #{tpu_custom_call.1} parent=0 // pred_check
    _
  $region7: #{tpu_custom_call.1} parent=0 // pred_check_branch
    %45 = sbr.rel (0) target = $region9
  $region8: #{tpu_custom_call.1} parent=0 // pred_region
    _
  $region9: #{tpu_custom_call.1} parent=0 // pred_fallthru
    _
  // Predicated region
  $region10: #{tpu_custom_call.1} parent=0 // pred_check
    _
  $region11: #{tpu_custom_call.1} parent=0 // pred_check_branch
    %47 = sbr.rel (0) target = $region13
  $region12: #{tpu_custom_call.1} parent=0 // pred_region
    _
  $region13: #{tpu_custom_call.1} parent=0 // pred_fallthru
    _

// kernel: tpu_custom_call.1
$region0: #{tpu_custom_call.1}
  #allocation0 [shape = 'u32[]', space=smem, size = 0x4, offset = 0x4, fixed_abs, tag = 'smem constant byte address 0x4 - core index']
  #allocation1 [shape = 'u32[144,128]{1,0:T(1,128)}', space=vmem, size = 0x12000, scoped, tag = 'internal scratch']
  %s0 = inlined_call_operand.vmem [shape: f32[128,16], index: 0, kind: input, shape index: {}]
  %s1 = inlined_call_operand.vmem [shape: f32[16,12], index: 1, kind: input, shape index: {}]
  %s2 = inlined_call_operand.vmem [shape: f32[1,12], index: 2, kind: input, shape index: {}]
  %s3 = inlined_call_operand.vmem [shape: f32[128,12], index: 3, kind: output, shape index: {}]
  %s4 = sld [smem:[#allocation0]]
  $region22: #{tpu_custom_call.1} parent=0
    _
  %s6 = ssub.s32 1, %s4
  %s7 = scalar_select 0, %s6, %s4
  // Predicated region
  $region2: #{tpu_custom_call.1} parent=0 // pred_check
    _
  $region3: #{tpu_custom_call.1} parent=0 // pred_check_branch
    %9 = sbr.rel (0) target = $region5
  $region4: #{tpu_custom_call.1} parent=0 // pred_region
    _
  $region5: #{tpu_custom_call.1} parent=0 // pred_fallthru
    _
  // Predicated region
  $region6: #{tpu_custom_call.1} parent=0 // pred_check
    _
  $region7: #{tpu_custom_call.1} parent=0 // pred_check_branch
    %11 = sbr.rel (0) target = $region9
  $region8: #{tpu_custom_call.1} parent=0 // pred_region
    _
  $region9: #{tpu_custom_call.1} parent=0 // pred_fallthru
    _
  // Predicated region
  $region10: #{tpu_custom_call.1} parent=0 // pred_check
    _
  $region11: #{tpu_custom_call.1} parent=0 // pred_check_branch
    %13 = sbr.rel (0) target = $region13
  $region12: #{tpu_custom_call.1} parent=0 // pred_region
    _
  $region13: #{tpu_custom_call.1} parent=0 // pred_fallthru
    _
  %v14 = vld [vmem:[%s0] sm:$0xff]
  %v15 = vld [vmem:[%s0 + $0x8] sm:$0xff]
  %v16 = vld [vmem:[%s0 + $0x10] sm:$0xff]
  %v17 = vld [vmem:[%s0 + $0x18] sm:$0xff]
  %v18 = vld [vmem:[%s0 + $0x20] sm:$0xff]
  %v19 = vld [vmem:[%s0 + $0x28] sm:$0xff]
  %v20 = vld [vmem:[%s0 + $0x30] sm:$0xff]
  %v21 = vld [vmem:[%s0 + $0x38] sm:$0xff]
  %v22 = vld [vmem:[%s0 + $0x40] sm:$0xff]
  %v23 = vld [vmem:[%s0 + $0x48] sm:$0xff]
  %v24 = vld [vmem:[%s0 + $0x50] sm:$0xff]
  %v25 = vld [vmem:[%s0 + $0x58] sm:$0xff]
  %v26 = vld [vmem:[%s0 + $0x60] sm:$0xff]
  %v27 = vld [vmem:[%s0 + $0x68] sm:$0xff]
  %v28 = vld [vmem:[%s0 + $0x70] sm:$0xff]
  %v29 = vld [vmem:[%s0 + $0x78] sm:$0xff]
  %v30 = vld [vmem:[%s1] sm:$0xff]
  %v31 = vld [vmem:[%s1 + $0x8] sm:$0xff]
  %v32 = vld [vmem:[%s2] sm:$0x1]
  %v34 = vlaneseq
  %v35 = vshrl.u32 %v34, 7
  %v36 = vsub.s32 0, %v35
  %v37 = vrot.slane %v32, %v36
  %vm39 = vcmask 130048
  %v41 = vsel %vm39, %v14, 0
  %v44 = vsel %vm39, %v15, 0
  %v47 = vsel %vm39, %v16, 0
  %v50 = vsel %vm39, %v17, 0
  %v53 = vsel %vm39, %v18, 0
  %v56 = vsel %vm39, %v19, 0
  %v59 = vsel %vm39, %v20, 0
  %v62 = vsel %vm39, %v21, 0
  %v65 = vsel %vm39, %v22, 0
  %v68 = vsel %vm39, %v23, 0
  %v71 = vsel %vm39, %v24, 0
  %v74 = vsel %vm39, %v25, 0
  %v77 = vsel %vm39, %v26, 0
  %v80 = vsel %vm39, %v27, 0
  %v83 = vsel %vm39, %v28, 0
  %v86 = vsel %vm39, %v29, 0
  %88 = vmatprep.subr.mxu0 0.0
  %89 = vmatpush1.msra.mxu0 %v30
  %90 = vmatprep.subr.mxu0 0.0
  %91 = vmatpush1.msra.mxu0 %v31
  %92 = vmatprep.subr.mxu0 0.0
  %93 = vmatpush1.msra.mxu0 0.0
  %94 = vmatprep.subr.mxu0 0.0
  %95 = vmatpush1.msra.mxu0 0.0
  %96 = vmatprep.subr.mxu0 0.0
  %97 = vmatpush1.msra.mxu0 0.0
  %98 = vmatprep.subr.mxu0 0.0
  %99 = vmatpush1.msra.mxu0 0.0
  %100 = vmatprep.subr.mxu0 0.0
  %101 = vmatpush1.msra.mxu0 0.0
  %102 = vmatprep.subr.mxu0 0.0
  %103 = vmatpush1.msra.mxu0 0.0
  %104 = vmatprep.subr.mxu0 0.0
  %105 = vmatpush1.msra.mxu0 0.0
  %106 = vmatprep.subr.mxu0 0.0
  %107 = vmatpush1.msra.mxu0 0.0
  %108 = vmatprep.subr.mxu0 0.0
  %109 = vmatpush1.msra.mxu0 0.0
  %110 = vmatprep.subr.mxu0 0.0
  %111 = vmatpush1.msra.mxu0 0.0
  %112 = vmatprep.subr.mxu0 0.0
  %113 = vmatpush1.msra.mxu0 0.0
  %114 = vmatprep.subr.mxu0 0.0
  %115 = vmatpush1.msra.mxu0 0.0
  %116 = vmatprep.subr.mxu0 0.0
  %117 = vmatpush1.msra.mxu0 0.0
  %118 = vmatprep.subr.mxu0 0.0
  %119 = vmatpush1.msra.mxu0 0.0
  %120 = vmatprep.subr.mxu0 0.0
  %121 = vmatpush1.msra.mxu0 0.0
  %122 = vmatprep.subr.mxu0 0.0
  %123 = vmatpush1.msra.mxu0 0.0
  %124 = vmatprep.subr.mxu0 0.0
  %125 = vmatpush1.msra.mxu0 0.0
  %126 = vmatprep.subr.mxu0 0.0
  %127 = vmatpush1.msra.mxu0 0.0
  %128 = vmatprep.subr.mxu0 0.0
  %129 = vmatpush1.msra.mxu0 0.0
  %130 = vmatprep.subr.mxu0 0.0
  %131 = vmatpush1.msra.mxu0 0.0
  %132 = vmatprep.subr.mxu0 0.0
  %133 = vmatpush1.msra.mxu0 0.0
  %134 = vmatprep.subr.mxu0 0.0
  %135 = vmatpush1.msra.mxu0 0.0
  %136 = vmatprep.subr.mxu0 0.0
  %137 = vmatpush1.msra.mxu0 0.0
  %138 = vmatprep.subr.mxu0 0.0
  %139 = vmatpush1.msra.mxu0 0.0
  %140 = vmatprep.subr.mxu0 0.0
  %141 = vmatpush1.msra.mxu0 0.0
  %142 = vmatprep.subr.mxu0 0.0
  %143 = vmatpush1.msra.mxu0 0.0
  %144 = vmatprep.subr.mxu0 0.0
  %145 = vmatpush1.msra.mxu0 0.0
  %146 = vmatprep.subr.mxu0 0.0
  %147 = vmatpush1.msra.mxu0 0.0
  %148 = vmatprep.subr.mxu0 0.0
  %149 = vmatpush1.msra.mxu0 0.0
  %150 = vmatprep.subr.mxu0 0.0
  %151 = vmatpush1.msra.mxu0 0.0
  %152 = vmatprep.mubr.f32.mxu0 0.0
  %153 = vmatmul.mubr.f32.gmra.mrb[0].mxu0 %v41
  %v154 = vpop.f32.mrb[0].mxu0
  %v155 = vadd.f32 %v37, %v154
  %v156 = vpop.f32.mrb[0].mxu0
  %157 = vmatprep.mubr.f32.mxu0 0.0
  %158 = vmatmul.mubr.f32.gmra.mrb[0].mxu0 %v44
  %v159 = vpop.f32.mrb[0].mxu0
  %v160 = vadd.f32 %v37, %v159
  %v161 = vpop.f32.mrb[0].mxu0
  %162 = vmatprep.mubr.f32.mxu0 0.0
  %163 = vmatmul.mubr.f32.gmra.mrb[0].mxu0 %v47
  %v164 = vpop.f32.mrb[0].mxu0
  %v165 = vadd.f32 %v37, %v164
  %v166 = vpop.f32.mrb[0].mxu0
  %167 = vmatprep.mubr.f32.mxu0 0.0
  %168 = vmatmul.mubr.f32.gmra.mrb[0].mxu0 %v50
  %v169 = vpop.f32.mrb[0].mxu0
  %v170 = vadd.f32 %v37, %v169
  %v171 = vpop.f32.mrb[0].mxu0
  %172 = vmatprep.mubr.f32.mxu0 0.0
  %173 = vmatmul.mubr.f32.gmra.mrb[0].mxu0 %v53
  %v174 = vpop.f32.mrb[0].mxu0
  %v175 = vadd.f32 %v37, %v174
  %v176 = vpop.f32.mrb[0].mxu0
  %177 = vmatprep.mubr.f32.mxu0 0.0
  %178 = vmatmul.mubr.f32.gmra.mrb[0].mxu0 %v56
  %v179 = vpop.f32.mrb[0].mxu0
  %v180 = vadd.f32 %v37, %v179
  %v181 = vpop.f32.mrb[0].mxu0
  %182 = vmatprep.mubr.f32.mxu0 0.0
  %183 = vmatmul.mubr.f32.gmra.mrb[0].mxu0 %v59
  %v184 = vpop.f32.mrb[0].mxu0
  %v185 = vadd.f32 %v37, %v184
  %v186 = vpop.f32.mrb[0].mxu0
  %187 = vmatprep.mubr.f32.mxu0 0.0
  %188 = vmatmul.mubr.f32.gmra.mrb[0].mxu0 %v62
  %v189 = vpop.f32.mrb[0].mxu0
  %v190 = vadd.f32 %v37, %v189
  %v191 = vpop.f32.mrb[0].mxu0
  %192 = vmatprep.mubr.f32.mxu0 0.0
  %193 = vmatmul.mubr.f32.gmra.mrb[0].mxu0 %v65
  %v194 = vpop.f32.mrb[0].mxu0
  %v195 = vadd.f32 %v37, %v194
  %v196 = vpop.f32.mrb[0].mxu0
  %197 = vmatprep.mubr.f32.mxu0 0.0
  %198 = vmatmul.mubr.f32.gmra.mrb[0].mxu0 %v68
  %v199 = vpop.f32.mrb[0].mxu0
  %v200 = vadd.f32 %v37, %v199
  %v201 = vpop.f32.mrb[0].mxu0
  %202 = vmatprep.mubr.f32.mxu0 0.0
  %203 = vmatmul.mubr.f32.gmra.mrb[0].mxu0 %v71
  %v204 = vpop.f32.mrb[0].mxu0
  %v205 = vadd.f32 %v37, %v204
  %v206 = vpop.f32.mrb[0].mxu0
  %207 = vmatprep.mubr.f32.mxu0 0.0
  %208 = vmatmul.mubr.f32.gmra.mrb[0].mxu0 %v74
  %v209 = vpop.f32.mrb[0].mxu0
  %v210 = vadd.f32 %v37, %v209
  %v211 = vpop.f32.mrb[0].mxu0
  %212 = vmatprep.mubr.f32.mxu0 0.0
  %213 = vmatmul.mubr.f32.gmra.mrb[0].mxu0 %v77
  %v214 = vpop.f32.mrb[0].mxu0
  %v215 = vadd.f32 %v37, %v214
  %v216 = vpop.f32.mrb[0].mxu0
  %217 = vmatprep.mubr.f32.mxu0 0.0
  %218 = vmatmul.mubr.f32.gmra.mrb[0].mxu0 %v80
  %v219 = vpop.f32.mrb[0].mxu0
  %v220 = vadd.f32 %v37, %v219
  %v221 = vpop.f32.mrb[0].mxu0
  %222 = vmatprep.mubr.f32.mxu0 0.0
  %223 = vmatmul.mubr.f32.gmra.mrb[0].mxu0 %v83
  %v224 = vpop.f32.mrb[0].mxu0
  %v225 = vadd.f32 %v37, %v224
  %v226 = vpop.f32.mrb[0].mxu0
  %227 = vmatprep.mubr.f32.mxu0 0.0
  %228 = vmatmul.mubr.f32.gmra.mrb[0].mxu0 %v86
  %v229 = vpop.f32.mrb[0].mxu0
  %v230 = vadd.f32 %v37, %v229
  %v231 = vpop.f32.mrb[0].mxu0
  %232 = vdwg.mxu0
  %vm233 = vcmask 97280
  %234 = vst.msk [vmem:[%s3] sm:$0xff] %vm233, %v155
  %235 = vst.msk [vmem:[%s3 + $0x8] sm:$0xff] %vm233, %v160
  %236 = vst.msk [vmem:[%s3 + $0x10] sm:$0xff] %vm233, %v165
  %237 = vst.msk [vmem:[%s3 + $0x18] sm:$0xff] %vm233, %v170
  %238 = vst.msk [vmem:[%s3 + $0x20] sm:$0xff] %vm233, %v175
  %239 = vst.msk [vmem:[%s3 + $0x28] sm:$0xff] %vm233, %v180
  %240 = vst.msk [vmem:[%s3 + $0x30] sm:$0xff] %vm233, %v185
  %241 = vst.msk [vmem:[%s3 + $0x38] sm:$0xff] %vm233, %v190
  %242 = vst.msk [vmem:[%s3 + $0x40] sm:$0xff] %vm233, %v195
  %243 = vst.msk [vmem:[%s3 + $0x48] sm:$0xff] %vm233, %v200
  %244 = vst.msk [vmem:[%s3 + $0x50] sm:$0xff] %vm233, %v205
  %245 = vst.msk [vmem:[%s3 + $0x58] sm:$0xff] %vm233, %v210
  %246 = vst.msk [vmem:[%s3 + $0x60] sm:$0xff] %vm233, %v215
  %247 = vst.msk [vmem:[%s3 + $0x68] sm:$0xff] %vm233, %v220
  %248 = vst.msk [vmem:[%s3 + $0x70] sm:$0xff] %vm233, %v225
  %249 = vst.msk [vmem:[%s3 + $0x78] sm:$0xff] %vm233, %v230
  // Predicated region
  $region14: #{tpu_custom_call.1} parent=0 // pred_check
    _
  $region15: #{tpu_custom_call.1} parent=0 // pred_check_branch
    %251 = sbr.rel (0) target = $region17
  $region16: #{tpu_custom_call.1} parent=0 // pred_region
    _
  $region17: #{tpu_custom_call.1} parent=0 // pred_fallthru
    _
  // Predicated region
  $region18: #{tpu_custom_call.1} parent=0 // pred_check
    _
  $region19: #{tpu_custom_call.1} parent=0 // pred_check_branch
    %253 = sbr.rel (0) target = $region21
  $region20: #{tpu_custom_call.1} parent=0 // pred_region
    _
  $region21: #{tpu_custom_call.1} parent=0 // pred_fallthru
    _

</llo_original>
